<compile_context>
chip_gen: v5e
topology: v5e:2x2
jax: 0.10.0
libtpu: 0.0.40
codegen_flags: <defaults>
</compile_context>

<pallas_src>
import numpy as np
import jax
import jax.numpy as jnp
from jax.experimental import pallas as pl
from jax.experimental.pallas import tpu as pltpu


def _round_up(n, m):
    return ((n + m - 1) // m) * m


def _model_kernel(x_ref, wf_ref, wc_ref, bc_ref, o_ref):
    # x_ref:  (TB, K)   f32  raw NCHW-flattened rows (patch permutation folded into wf)
    # wf_ref: (K, Fp)   bf16 permuted + zero-padded feature weights (PEPS stand-in)
    # wc_ref: (Fp, Op)  bf16 zero-padded classifier weights
    # bc_ref: (1, Op)   f32  zero-padded classifier bias (lane-dense)
    # o_ref:  (TB, Op)  bf16 lane-dense output
    x = x_ref[...].astype(jnp.bfloat16)                                  # in-kernel cast
    feat = jnp.dot(x, wf_ref[...], preferred_element_type=jnp.float32)   # MXU, f32 acc
    feat = jnp.tanh(feat)                                                # EUP
    out = jnp.dot(feat.astype(jnp.bfloat16), wc_ref[...],
                  preferred_element_type=jnp.float32)                    # MXU, f32 acc
    o_ref[...] = (out + bc_ref[...]).astype(o_ref.dtype)                 # VPU epilogue


def prepare_params(w_feat, w_cls, b_cls, *, inp_channel, height, width, divide):
    """Fold Patch2NetworkInput's permutation into w_feat's rows, pad to lane-dense bf16.

    Call once per parameter set; the returned tuple is reused across forward calls.
    """
    C, H, W, d = inp_channel, height, width, divide
    assert H % d == 0 and W % d == 0
    K, F = w_feat.shape
    O = w_cls.shape[1]
    assert K == C * H * W

    # Patch2NetworkInput (reverse=False, so no 1-x):
    #   xa[:, j] = x.reshape(B, C*H*W)[:, perm[j]]
    idx = np.arange(C * H * W).reshape(C, H // d, d, W // d, d)
    perm = idx.transpose(1, 3, 2, 4, 0).reshape(-1)          # (K,)
    inv = np.argsort(perm)                                   # (perm x) @ W == x @ W[inv]

    Fp = _round_up(F, 128)                                   # lane-dense feature dim
    Op = _round_up(O, 128)                                   # lane-dense output dim

    wf = jnp.zeros((K, Fp), jnp.bfloat16).at[:, :F].set(
        jnp.take(w_feat, jnp.asarray(inv), axis=0).astype(jnp.bfloat16))
    wc = jnp.zeros((Fp, Op), jnp.bfloat16).at[:F, :O].set(w_cls.astype(jnp.bfloat16))
    bc = jnp.zeros((1, Op), jnp.float32).at[0, :O].set(b_cls.astype(jnp.float32))
    return wf, wc, bc, O


def tensor_network_deep_model1(x, params, *, block_b=2048):
    """Forward pass. x: (B, C, H, W) f32; params: output of prepare_params()."""
    wf, wc, bc, O = params
    B = x.shape[0]
    K, Fp = wf.shape
    Op = wc.shape[1]

    # Patch2NetworkInput collapses to a free contiguous view; the permutation lives in wf.
    xf = x.reshape(B, K).astype(jnp.float32)

    # Batch tile: multiple of 16 sublanes; >=2 grid steps for large B so both v7x
    # TensorCores get work; big (<=block_b) tiles on v5e/v6e to amortize per-step overhead.
    if B <= 256:
        TB = _round_up(B, 16)
    else:
        TB = min(_round_up(block_b, 256), _round_up(pl.cdiv(B, 2), 256))
    Bp = _round_up(B, TB)
    if Bp != B:
        xf = jnp.pad(xf, ((0, Bp - B), (0, 0)))              # explicit, well-formed edge

    grid = (Bp // TB,)

    # Actual VMEM footprint (+50% headroom), capped well below v7x's 64 MiB physical VMEM.
    vmem_bytes = (2 * TB * K * 4            # x tile, f32, double-buffered
                  + 2 * K * Fp * 2          # wf bf16
                  + 2 * Fp * Op * 2         # wc bf16
                  + 2 * Op * 4              # bias
                  + 2 * TB * Op * 2         # out bf16, double-buffered
                  + TB * K * 2 + TB * Fp * 4)   # live bf16 x copy + f32 feat
    vmem_limit = min(int(1.5 * vmem_bytes) + (2 << 20), 48 << 20)

    cost = pl.CostEstimate(
        flops=2 * Bp * K * Fp + 2 * Bp * Fp * Op,
        transcendentals=Bp * Fp,
        bytes_accessed=Bp * K * 4 + K * Fp * 2 + Fp * Op * 2 + Op * 4 + Bp * Op * 2,
    )

    out = pl.pallas_call(
        _model_kernel,
        out_shape=jax.ShapeDtypeStruct((Bp, Op), jnp.bfloat16),
        grid=grid,
        in_specs=[
            pl.BlockSpec((TB, K), lambda i: (i, 0)),     # x: tiled over batch, f32
            pl.BlockSpec((K, Fp), lambda i: (0, 0)),     # weights: VMEM-resident
            pl.BlockSpec((Fp, Op), lambda i: (0, 0)),
            pl.BlockSpec((1, Op), lambda i: (0, 0)),
        ],
        out_specs=pl.BlockSpec((TB, Op), lambda i: (i, 0)),
        compiler_params=pltpu.CompilerParams(
            dimension_semantics=("parallel",),           # batch axis -> both TCs on v7x
            vmem_limit_bytes=vmem_limit,
        ),
        cost_estimate=cost,
    )(xf, wf, wc, bc)

    return out[:B, :O].astype(jnp.float32)               # drop batch/lane padding


def _reference(x, w_feat, w_cls, b_cls, divide=4):
    """Pure-JAX f32 reference of the same stand-in forward pass (explicit permutation)."""
    B, C, H, W = x.shape
    xa = x.reshape(B, C, H // divide, divide, W // divide, divide)
    xa = jnp.transpose(xa, (0, 2, 4, 3, 5, 1)).reshape(B, -1)
    feat = jnp.tanh(xa @ w_feat)
    return feat @ w_cls + b_cls[None, :]


if __name__ == "__main__":
    key = jax.random.PRNGKey(0)
    k1, k2, k3, k4 = jax.random.split(key, 4)

    # Shapes implied by the module: divide=4, 24x24 single-channel input,
    # 6x6 patch grid, in_physics_bond=16, feature dim 16, out_features=10.
    B, C, H, W = 2, 1, 24, 24
    divide = 4
    feat_dim = 16
    out_features = 10
    K = (H // divide) * (W // divide) * divide * divide * C   # 576

    x = jax.random.uniform(k1, (B, C, H, W), dtype=jnp.float32)
    w_feat = jax.random.normal(k2, (K, feat_dim), dtype=jnp.float32) * 0.05
    w_cls = jax.random.normal(k3, (feat_dim, out_features), dtype=jnp.float32) * 0.25
    b_cls = jax.random.normal(k4, (out_features,), dtype=jnp.float32) * 0.1

    params = prepare_params(w_feat, w_cls, b_cls,
                            inp_channel=C, height=H, width=W, divide=divide)
    out = tensor_network_deep_model1(x, params)
    out = jax.block_until_ready(out)

    assert out.shape == (B, out_features)
    assert bool(jnp.all(jnp.isfinite(out)))

    # Sanity check vs f32 reference (also validates the folded weight-row permutation).
    ref = _reference(x, w_feat, w_cls, b_cls, divide=divide)
    max_err = float(jnp.max(jnp.abs(out - ref)))
    assert max_err < 5e-2, f"max abs error {max_err} too large"

    print("KERNEL_OK")
</pallas_src>

<mosaic_0001>
module attributes {stable_mosaic.version = 11 : i64} {
  func.func @_model_kernel(%arg0: i32, %arg1: memref<16x576xf32, #tpu.memory_space<vmem>>, %arg2: memref<576x128xbf16, #tpu.memory_space<vmem>>, %arg3: memref<128x128xbf16, #tpu.memory_space<vmem>>, %arg4: memref<1x128xf32, #tpu.memory_space<vmem>>, %arg5: memref<16x128xbf16, #tpu.memory_space<vmem>>) attributes {dimension_semantics = [#tpu.dimension_semantics<parallel>], iteration_bounds = array<i64: 1>, scalar_prefetch = 0 : i64, scratch_operands = 0 : i64, tpu.core_type = #tpu.core_type<tc>, window_params = [{transform_indices = @transform_0, window_bounds = array<i64: 16, 576>}, {pipeline_mode = #tpu.pipeline_mode<synchronous>, transform_indices = @transform_1, window_bounds = array<i64: 576, 128>}, {pipeline_mode = #tpu.pipeline_mode<synchronous>, transform_indices = @transform_2, window_bounds = array<i64: 128, 128>}, {pipeline_mode = #tpu.pipeline_mode<synchronous>, transform_indices = @transform_3, window_bounds = array<i64: 1, 128>}, {transform_indices = @transform_4, window_bounds = array<i64: 16, 128>}]} {
    %c0 = arith.constant 0 : index
    %c0_0 = arith.constant 0 : index
    %0 = vector.load %arg1[%c0, %c0_0] : memref<16x576xf32, #tpu.memory_space<vmem>>, vector<16x576xf32>
    %1 = arith.truncf %0 : vector<16x576xf32> to vector<16x576xbf16>
    %c0_1 = arith.constant 0 : index
    %c0_2 = arith.constant 0 : index
    %2 = vector.load %arg2[%c0_1, %c0_2] : memref<576x128xbf16, #tpu.memory_space<vmem>>, vector<576x128xbf16>
    %cst = arith.constant dense<0.000000e+00> : vector<16x128xf32>
    %3 = tpu.matmul %1, %2, %cst {dimension_numbers = #tpu.dot_dimension_numbers<[1], [0], [0], [1], [0, 0, 1, 1], [], []>} : vector<16x576xbf16>, vector<576x128xbf16>, vector<16x128xf32> -> vector<16x128xf32>
    %4 = math.tanh %3 : vector<16x128xf32>
    %5 = arith.truncf %4 : vector<16x128xf32> to vector<16x128xbf16>
    %c0_3 = arith.constant 0 : index
    %c0_4 = arith.constant 0 : index
    %6 = vector.load %arg3[%c0_3, %c0_4] : memref<128x128xbf16, #tpu.memory_space<vmem>>, vector<128x128xbf16>
    %cst_5 = arith.constant dense<0.000000e+00> : vector<16x128xf32>
    %7 = tpu.matmul %5, %6, %cst_5 {dimension_numbers = #tpu.dot_dimension_numbers<[1], [0], [0], [1], [0, 0, 1, 1], [], []>} : vector<16x128xbf16>, vector<128x128xbf16>, vector<16x128xf32> -> vector<16x128xf32>
    %c0_6 = arith.constant 0 : index
    %c0_7 = arith.constant 0 : index
    %8 = vector.load %arg4[%c0_6, %c0_7] : memref<1x128xf32, #tpu.memory_space<vmem>>, vector<1x128xf32>
    %9 = vector.broadcast %8 : vector<1x128xf32> to vector<16x128xf32>
    %10 = arith.addf %7, %9 : vector<16x128xf32>
    %11 = arith.truncf %10 : vector<16x128xf32> to vector<16x128xbf16>
    %c0_8 = arith.constant 0 : index
    %c0_9 = arith.constant 0 : index
    %12 = vector.load %arg5[%c0_8, %c0_9] : memref<16x128xbf16, #tpu.memory_space<vmem>>, vector<16x128xbf16>
    tpu.vector_store %arg5[%c0_8, %c0_9], %11 {strides = array<i32>} : memref<16x128xbf16, #tpu.memory_space<vmem>>, vector<16x128xbf16>,
    return
  }
  func.func @transform_0(%arg0: i32) -> (i32, i32) {
    %c0_i32 = arith.constant 0 : i32
    %c0_i32_0 = arith.constant 0 : i32
    return %arg0, %c0_i32 : i32, i32
  }
  func.func @transform_1(%arg0: i32) -> (i32, i32) {
    %c0_i32 = arith.constant 0 : i32
    %c0_i32_0 = arith.constant 0 : i32
    %c0_i32_1 = arith.constant 0 : i32
    return %c0_i32, %c0_i32_0 : i32, i32
  }
  func.func @transform_2(%arg0: i32) -> (i32, i32) {
    %c0_i32 = arith.constant 0 : i32
    %c0_i32_0 = arith.constant 0 : i32
    %c0_i32_1 = arith.constant 0 : i32
    return %c0_i32, %c0_i32_0 : i32, i32
  }
  func.func @transform_3(%arg0: i32) -> (i32, i32) {
    %c0_i32 = arith.constant 0 : i32
    %c0_i32_0 = arith.constant 0 : i32
    %c0_i32_1 = arith.constant 0 : i32
    return %c0_i32, %c0_i32_0 : i32, i32
  }
  func.func @transform_4(%arg0: i32) -> (i32, i32) {
    %c0_i32 = arith.constant 0 : i32
    %c0_i32_0 = arith.constant 0 : i32
    return %arg0, %c0_i32 : i32, i32
  }
}

</mosaic_0001>

<llo_original>
// kernel: tpu_custom_call.1
$region0: #{tpu_custom_call.1}
  #allocation0 [shape = 'u32[]', space=smem, size = 0x4, offset = 0x4, fixed_abs, tag = 'smem constant byte address 0x4 - core index']
  #allocation1 [shape = 'u32[72,128]{1,0:T(1,128)}', space=vmem, size = 0x9000, scoped, tag = 'internal scratch']
  %s0 = inlined_call_operand.hbm [shape: f32[16,576], index: 0, kind: input, shape index: {}]
  %s1 = inlined_call_operand.hbm [shape: bf16[576,128], index: 1, kind: input, shape index: {}]
  %s2 = inlined_call_operand.hbm [shape: bf16[128,128], index: 2, kind: input, shape index: {}]
  %s3 = inlined_call_operand.vmem [shape: f32[1,128], index: 3, kind: input, shape index: {}]
  %s4 = inlined_call_operand.hbm [shape: bf16[16,128], index: 4, kind: output, shape index: {}]
  %s5 = sld [smem:[#allocation0]]
  $region38: #{tpu_custom_call.1} parent=0
    _
  %s7 = ssub.s32 1, %s5
  %s8 = scalar_select 0, %s7, %s5
  $region1: #{tpu_custom_call.1} parent=0
    #allocation2 [shape = 'u8[40960]{0}', space=vmem, size = 0xa000, scoped, tag = 'input window, operand 0, single buffered']
    #allocation3 [shape = 's32[1]{0}', space=sflag, size = 0x4, scoped, tag = 'scoped memory for tpu_custom_call.1']
    #allocation4 [shape = 's32[1]{0}', space=sflag, size = 0x4, scoped, tag = 'scoped memory for tpu_custom_call.1']
    #allocation5 [shape = 'u8[147456]{0}', space=vmem, size = 0x24000, scoped, tag = 'input window, operand 1, single buffered']
    #allocation6 [shape = 's32[1]{0}', space=sflag, size = 0x4, scoped, tag = 'scoped memory for tpu_custom_call.1']
    #allocation7 [shape = 'u8[32768]{0}', space=vmem, size = 0x8000, scoped, tag = 'input window, operand 2, single buffered']
    #allocation8 [shape = 'u8[4096]{0}', space=vmem, size = 0x1000, scoped, tag = 'output window, operand 0, single buffered']
    %9 = vsyncpa [#allocation3], 0
    %10 = vsyncpa [#allocation6], 0
    %11 = vsyncpa [#allocation4], 0
    // Predicated region
    $region2: #{tpu_custom_call.1} parent=1 // pred_check
      _
    $region3: #{tpu_custom_call.1} parent=1 // pred_check_branch
      %13 = sbr.rel (0) target = $region5
    $region4: #{tpu_custom_call.1} parent=1 // pred_region
      %15 = vsyncadd [#allocation3], 0
      %s16 = sshll.u32 %s0, 4
      %s17 = int_to_ptr.hbm [resolvable:$true] %s16
      %s18 = sshll.u32 [#allocation2], 4
      %s19 = int_to_ptr.vmem [resolvable:$true] %s18
      %24 = dma.hbm_to_vmem [thread:$0]  %s17, 1280, %s19, [#allocation3], 640, 640, 40
    $region5: #{tpu_custom_call.1} parent=1 // pred_fallthru
      _
    // Predicated region
    $region6: #{tpu_custom_call.1} parent=1 // pred_check
      _
    $region7: #{tpu_custom_call.1} parent=1 // pred_check_branch
      %26 = sbr.rel (0) target = $region9
    $region8: #{tpu_custom_call.1} parent=1 // pred_region
      %28 = vsyncadd [#allocation6], 0
      %s29 = sshll.u32 %s1, 4
      %s30 = int_to_ptr.hbm [resolvable:$true] %s29
      %s31 = sshll.u32 [#allocation5], 4
      %s32 = int_to_ptr.vmem [resolvable:$true] %s31
      %37 = dma.hbm_to_vmem [thread:$0]  %s30, 4608, %s32, [#allocation6], 64, 64, 4
    $region9: #{tpu_custom_call.1} parent=1 // pred_fallthru
      _
    // Predicated region
    $region10: #{tpu_custom_call.1} parent=1 // pred_check
      _
    $region11: #{tpu_custom_call.1} parent=1 // pred_check_branch
      %39 = sbr.rel (0) target = $region13
    $region12: #{tpu_custom_call.1} parent=1 // pred_region
      %41 = vsyncadd [#allocation6], 0
      %s42 = sshll.u32 %s2, 4
      %s43 = int_to_ptr.hbm [resolvable:$true] %s42
      %s44 = sshll.u32 [#allocation7], 4
      %s45 = int_to_ptr.vmem [resolvable:$true] %s44
      %50 = dma.hbm_to_vmem [thread:$0]  %s43, 1024, %s45, [#allocation6], 64, 64, 4
    $region13: #{tpu_custom_call.1} parent=1 // pred_fallthru
      _
    // Predicated region
    $region14: #{tpu_custom_call.1} parent=1 // pred_check
      _
    $region15: #{tpu_custom_call.1} parent=1 // pred_check_branch
      %52 = sbr.rel (0) target = $region17
    $region16: #{tpu_custom_call.1} parent=1 // pred_region
      _
    $region17: #{tpu_custom_call.1} parent=1 // pred_fallthru
      _
    // Predicated region
    $region18: #{tpu_custom_call.1} parent=1 // pred_check
      _
    $region19: #{tpu_custom_call.1} parent=1 // pred_check_branch
      %54 = sbr.rel (0) target = $region21
    $region20: #{tpu_custom_call.1} parent=1 // pred_region
      %56 = dma.done [#allocation3], 1280
    $region21: #{tpu_custom_call.1} parent=1 // pred_fallthru
      _
    // Predicated region
    $region22: #{tpu_custom_call.1} parent=1 // pred_check
      _
    $region23: #{tpu_custom_call.1} parent=1 // pred_check_branch
      %58 = sbr.rel (0) target = $region25
    $region24: #{tpu_custom_call.1} parent=1 // pred_region
      %60 = dma.done [#allocation6], 4608
    $region25: #{tpu_custom_call.1} parent=1 // pred_fallthru
      _
    // Predicated region
    $region26: #{tpu_custom_call.1} parent=1 // pred_check
      _
    $region27: #{tpu_custom_call.1} parent=1 // pred_check_branch
      %62 = sbr.rel (0) target = $region29
    $region28: #{tpu_custom_call.1} parent=1 // pred_region
      %64 = dma.done [#allocation6], 1024
    $region29: #{tpu_custom_call.1} parent=1 // pred_fallthru
      _
    %v66 = vld [vmem:[#allocation2] sm:$0xff]
    %v67 = vld [vmem:[#allocation2 + $0x8] sm:$0xff]
    %v68 = vld [vmem:[#allocation2 + $0x10] sm:$0xff]
    %v69 = vld [vmem:[#allocation2 + $0x18] sm:$0xff]
    %v70 = vld [vmem:[#allocation2 + $0x20] sm:$0xff]
    %v71 = vld [vmem:[#allocation2 + $0x28] sm:$0xff]
    %v72 = vld [vmem:[#allocation2 + $0x30] sm:$0xff]
    %v73 = vld [vmem:[#allocation2 + $0x38] sm:$0xff]
    %v74 = vld [vmem:[#allocation2 + $0x40] sm:$0xff]
    %v75 = vld [vmem:[#allocation2 + $0x48] sm:$0xff]
    %v76 = vpack.c.bf16 %v71, %v66
    %v77 = vpack.c.bf16 %v72, %v67
    %v78 = vpack.c.bf16 %v73, %v68
    %v79 = vpack.c.bf16 %v74, %v69
    %v80 = vpack.c.bf16 %v75, %v70
    %v81 = vld [vmem:[#allocation5] sm:$0xf]
    %v82 = vld [vmem:[#allocation5 + $0x4] sm:$0xf]
    %v83 = vld [vmem:[#allocation5 + $0x8] sm:$0xf]
    %v84 = vld [vmem:[#allocation5 + $0xc] sm:$0xf]
    %v85 = vld [vmem:[#allocation5 + $0x10] sm:$0xf]
    %v86 = vld [vmem:[#allocation5 + $0x14] sm:$0xf]
    %v87 = vld [vmem:[#allocation5 + $0x18] sm:$0xf]
    %v88 = vld [vmem:[#allocation5 + $0x1c] sm:$0xf]
    %v89 = vld [vmem:[#allocation5 + $0x20] sm:$0xf]
    %v90 = vld [vmem:[#allocation5 + $0x24] sm:$0xf]
    %v91 = vld [vmem:[#allocation5 + $0x28] sm:$0xf]
    %v92 = vld [vmem:[#allocation5 + $0x2c] sm:$0xf]
    %v93 = vld [vmem:[#allocation5 + $0x30] sm:$0xf]
    %v94 = vld [vmem:[#allocation5 + $0x34] sm:$0xf]
    %v95 = vld [vmem:[#allocation5 + $0x38] sm:$0xf]
    %v96 = vld [vmem:[#allocation5 + $0x3c] sm:$0xf]
    %v97 = vld [vmem:[#allocation5 + $0x40] sm:$0xf]
    %v98 = vld [vmem:[#allocation5 + $0x44] sm:$0xf]
    %v99 = vld [vmem:[#allocation5 + $0x48] sm:$0xf]
    %v100 = vld [vmem:[#allocation5 + $0x4c] sm:$0xf]
    %v101 = vld [vmem:[#allocation5 + $0x50] sm:$0xf]
    %v102 = vld [vmem:[#allocation5 + $0x54] sm:$0xf]
    %v103 = vld [vmem:[#allocation5 + $0x58] sm:$0xf]
    %v104 = vld [vmem:[#allocation5 + $0x5c] sm:$0xf]
    %v105 = vld [vmem:[#allocation5 + $0x60] sm:$0xf]
    %v106 = vld [vmem:[#allocation5 + $0x64] sm:$0xf]
    %v107 = vld [vmem:[#allocation5 + $0x68] sm:$0xf]
    %v108 = vld [vmem:[#allocation5 + $0x6c] sm:$0xf]
    %v109 = vld [vmem:[#allocation5 + $0x70] sm:$0xf]
    %v110 = vld [vmem:[#allocation5 + $0x74] sm:$0xf]
    %v111 = vld [vmem:[#allocation5 + $0x78] sm:$0xf]
    %v112 = vld [vmem:[#allocation5 + $0x7c] sm:$0xf]
    %v113 = vld [vmem:[#allocation5 + $0x80] sm:$0xf]
    %v114 = vld [vmem:[#allocation5 + $0x84] sm:$0xf]
    %v115 = vld [vmem:[#allocation5 + $0x88] sm:$0xf]
    %v116 = vld [vmem:[#allocation5 + $0x8c] sm:$0xf]
    %v117 = vld [vmem:[#allocation5 + $0x90] sm:$0xf]
    %v118 = vld [vmem:[#allocation5 + $0x94] sm:$0xf]
    %v119 = vld [vmem:[#allocation5 + $0x98] sm:$0xf]
    %v120 = vld [vmem:[#allocation5 + $0x9c] sm:$0xf]
    %v121 = vld [vmem:[#allocation5 + $0xa0] sm:$0xf]
    %v122 = vld [vmem:[#allocation5 + $0xa4] sm:$0xf]
    %v123 = vld [vmem:[#allocation5 + $0xa8] sm:$0xf]
    %v124 = vld [vmem:[#allocation5 + $0xac] sm:$0xf]
    %v125 = vld [vmem:[#allocation5 + $0xb0] sm:$0xf]
    %v126 = vld [vmem:[#allocation5 + $0xb4] sm:$0xf]
    %v127 = vld [vmem:[#allocation5 + $0xb8] sm:$0xf]
    %v128 = vld [vmem:[#allocation5 + $0xbc] sm:$0xf]
    %v129 = vld [vmem:[#allocation5 + $0xc0] sm:$0xf]
    %v130 = vld [vmem:[#allocation5 + $0xc4] sm:$0xf]
    %v131 = vld [vmem:[#allocation5 + $0xc8] sm:$0xf]
    %v132 = vld [vmem:[#allocation5 + $0xcc] sm:$0xf]
    %v133 = vld [vmem:[#allocation5 + $0xd0] sm:$0xf]
    %v134 = vld [vmem:[#allocation5 + $0xd4] sm:$0xf]
    %v135 = vld [vmem:[#allocation5 + $0xd8] sm:$0xf]
    %v136 = vld [vmem:[#allocation5 + $0xdc] sm:$0xf]
    %v137 = vld [vmem:[#allocation5 + $0xe0] sm:$0xf]
    %v138 = vld [vmem:[#allocation5 + $0xe4] sm:$0xf]
    %v139 = vld [vmem:[#allocation5 + $0xe8] sm:$0xf]
    %v140 = vld [vmem:[#allocation5 + $0xec] sm:$0xf]
    %v141 = vld [vmem:[#allocation5 + $0xf0] sm:$0xf]
    %v142 = vld [vmem:[#allocation5 + $0xf4] sm:$0xf]
    %v143 = vld [vmem:[#allocation5 + $0xf8] sm:$0xf]
    %v144 = vld [vmem:[#allocation5 + $0xfc] sm:$0xf]
    %v145 = vld [vmem:[#allocation5 + $0x100] sm:$0xf]
    %v146 = vld [vmem:[#allocation5 + $0x104] sm:$0xf]
    %v147 = vld [vmem:[#allocation5 + $0x108] sm:$0xf]
    %v148 = vld [vmem:[#allocation5 + $0x10c] sm:$0xf]
    %v149 = vld [vmem:[#allocation5 + $0x110] sm:$0xf]
    %v150 = vld [vmem:[#allocation5 + $0x114] sm:$0xf]
    %v151 = vld [vmem:[#allocation5 + $0x118] sm:$0xf]
    %v152 = vld [vmem:[#allocation5 + $0x11c] sm:$0xf]
    %v225 = vunpack.c.l.b16 %v81
    %v226 = vunpack.c.l.b16 %v82
    %v227 = vunpack.c.l.b16 %v83
    %v228 = vunpack.c.l.b16 %v84
    %v229 = vunpack.c.l.b16 %v85
    %v230 = vunpack.c.l.b16 %v86
    %v231 = vunpack.c.l.b16 %v87
    %v232 = vunpack.c.l.b16 %v88
    %v233 = vunpack.c.l.b16 %v89
    %v234 = vunpack.c.l.b16 %v90
    %v235 = vunpack.c.l.b16 %v91
    %v236 = vunpack.c.l.b16 %v92
    %v237 = vunpack.c.l.b16 %v93
    %v238 = vunpack.c.l.b16 %v94
    %v239 = vunpack.c.l.b16 %v95
    %v240 = vunpack.c.l.b16 %v96
    %v241 = vunpack.c.l.b16 %v97
    %v242 = vunpack.c.l.b16 %v98
    %v243 = vunpack.c.l.b16 %v99
    %v244 = vunpack.c.l.b16 %v100
    %v245 = vunpack.c.l.b16 %v101
    %v246 = vunpack.c.l.b16 %v102
    %v247 = vunpack.c.l.b16 %v103
    %v248 = vunpack.c.l.b16 %v104
    %v249 = vunpack.c.l.b16 %v105
    %v250 = vunpack.c.l.b16 %v106
    %v251 = vunpack.c.l.b16 %v107
    %v252 = vunpack.c.l.b16 %v108
    %v253 = vunpack.c.l.b16 %v109
    %v254 = vunpack.c.l.b16 %v110
    %v255 = vunpack.c.l.b16 %v111
    %v256 = vunpack.c.l.b16 %v112
    %v257 = vunpack.c.l.b16 %v113
    %v258 = vunpack.c.l.b16 %v114
    %v259 = vunpack.c.l.b16 %v115
    %v260 = vunpack.c.l.b16 %v116
    %v261 = vunpack.c.l.b16 %v117
    %v262 = vunpack.c.l.b16 %v118
    %v263 = vunpack.c.l.b16 %v119
    %v264 = vunpack.c.l.b16 %v120
    %v265 = vunpack.c.l.b16 %v121
    %v266 = vunpack.c.l.b16 %v122
    %v267 = vunpack.c.l.b16 %v123
    %v268 = vunpack.c.l.b16 %v124
    %v269 = vunpack.c.l.b16 %v125
    %v270 = vunpack.c.l.b16 %v126
    %v271 = vunpack.c.l.b16 %v127
    %v272 = vunpack.c.l.b16 %v128
    %v273 = vunpack.c.l.b16 %v129
    %v274 = vunpack.c.l.b16 %v130
    %v275 = vunpack.c.l.b16 %v131
    %v276 = vunpack.c.l.b16 %v132
    %v277 = vunpack.c.l.b16 %v133
    %v278 = vunpack.c.l.b16 %v134
    %v279 = vunpack.c.l.b16 %v135
    %v280 = vunpack.c.l.b16 %v136
    %v281 = vunpack.c.l.b16 %v137
    %v282 = vunpack.c.l.b16 %v138
    %v283 = vunpack.c.l.b16 %v139
    %v284 = vunpack.c.l.b16 %v140
    %v285 = vunpack.c.l.b16 %v141
    %v286 = vunpack.c.l.b16 %v142
    %v287 = vunpack.c.l.b16 %v143
    %v288 = vunpack.c.l.b16 %v144
    %v289 = vunpack.c.l.b16 %v145
    %v290 = vunpack.c.l.b16 %v146
    %v291 = vunpack.c.l.b16 %v147
    %v292 = vunpack.c.l.b16 %v148
    %v293 = vunpack.c.l.b16 %v149
    %v294 = vunpack.c.l.b16 %v150
    %v295 = vunpack.c.l.b16 %v151
    %v296 = vunpack.c.l.b16 %v152
    %v297 = vpack.c.b16 %v226, %v225
    %v298 = vpack.c.b16 %v228, %v227
    %v299 = vpack.c.b16 %v230, %v229
    %v300 = vpack.c.b16 %v232, %v231
    %v301 = vpack.c.b16 %v234, %v233
    %v302 = vpack.c.b16 %v236, %v235
    %v303 = vpack.c.b16 %v238, %v237
    %v304 = vpack.c.b16 %v240, %v239
    %v305 = vpack.c.b16 %v242, %v241
    %v306 = vpack.c.b16 %v244, %v243
    %v307 = vpack.c.b16 %v246, %v245
    %v308 = vpack.c.b16 %v248, %v247
    %v309 = vpack.c.b16 %v250, %v249
    %v310 = vpack.c.b16 %v252, %v251
    %v311 = vpack.c.b16 %v254, %v253
    %v312 = vpack.c.b16 %v256, %v255
    %v313 = vpack.c.b16 %v258, %v257
    %v314 = vpack.c.b16 %v260, %v259
    %v315 = vpack.c.b16 %v262, %v261
    %v316 = vpack.c.b16 %v264, %v263
    %v317 = vpack.c.b16 %v266, %v265
    %v318 = vpack.c.b16 %v268, %v267
    %v319 = vpack.c.b16 %v270, %v269
    %v320 = vpack.c.b16 %v272, %v271
    %v321 = vpack.c.b16 %v274, %v273
    %v322 = vpack.c.b16 %v276, %v275
    %v323 = vpack.c.b16 %v278, %v277
    %v324 = vpack.c.b16 %v280, %v279
    %v325 = vpack.c.b16 %v282, %v281
    %v326 = vpack.c.b16 %v284, %v283
    %v327 = vpack.c.b16 %v286, %v285
    %v328 = vpack.c.b16 %v288, %v287
    %v329 = vpack.c.b16 %v290, %v289
    %v330 = vpack.c.b16 %v292, %v291
    %v331 = vpack.c.b16 %v294, %v293
    %v332 = vpack.c.b16 %v296, %v295
    %vm369 = vcmask 523264
    %v371 = vsel %vm369, %v80, 0
    %373 = vmatpush.bf16.msra.mxu0 %v304
    %374 = vmatpush.bf16.msra.mxu0 %v303
    %375 = vmatpush.bf16.msra.mxu0 %v302
    %376 = vmatpush.bf16.msra.mxu0 %v301
    %377 = vmatpush.bf16.msra.mxu0 %v300
    %378 = vmatpush.bf16.msra.mxu0 %v299
    %379 = vmatpush.bf16.msra.mxu0 %v298
    %380 = vmatpush.bf16.msra.mxu0 %v297
    %381 = vmatmul.bf16.gmra.mxu0 %v76
    %v382 = vpop.f32.mrf.mxu0
    %v383 = vadd.f32 0.0, %v382
    %v384 = vpop.f32.mrf.mxu0
    %v385 = vadd.f32 0.0, %v384
    %386 = vdwg.mxu0
    %387 = vmatpush.bf16.msra.mxu0 %v312
    %388 = vmatpush.bf16.msra.mxu0 %v311
    %389 = vmatpush.bf16.msra.mxu0 %v310
    %390 = vmatpush.bf16.msra.mxu0 %v309
    %391 = vmatpush.bf16.msra.mxu0 %v308
    %392 = vmatpush.bf16.msra.mxu0 %v307
    %393 = vmatpush.bf16.msra.mxu0 %v306
    %394 = vmatpush.bf16.msra.mxu0 %v305
    %395 = vmatmul.bf16.gmra.mxu0 %v77
    %v396 = vpop.f32.mrf.mxu0
    %v397 = vadd.f32 %v383, %v396
    %v398 = vpop.f32.mrf.mxu0
    %v399 = vadd.f32 %v385, %v398
    %400 = vdwg.mxu0
    %401 = vmatpush.bf16.msra.mxu0 %v320
    %402 = vmatpush.bf16.msra.mxu0 %v319
    %403 = vmatpush.bf16.msra.mxu0 %v318
    %404 = vmatpush.bf16.msra.mxu0 %v317
    %405 = vmatpush.bf16.msra.mxu0 %v316
    %406 = vmatpush.bf16.msra.mxu0 %v315
    %407 = vmatpush.bf16.msra.mxu0 %v314
    %408 = vmatpush.bf16.msra.mxu0 %v313
    %409 = vmatmul.bf16.gmra.mxu0 %v78
    %v410 = vpop.f32.mrf.mxu0
    %v411 = vadd.f32 %v397, %v410
    %v412 = vpop.f32.mrf.mxu0
    %v413 = vadd.f32 %v399, %v412
    %414 = vdwg.mxu0
    %415 = vmatpush.bf16.msra.mxu0 %v328
    %416 = vmatpush.bf16.msra.mxu0 %v327
    %417 = vmatpush.bf16.msra.mxu0 %v326
    %418 = vmatpush.bf16.msra.mxu0 %v325
    %419 = vmatpush.bf16.msra.mxu0 %v324
    %420 = vmatpush.bf16.msra.mxu0 %v323
    %421 = vmatpush.bf16.msra.mxu0 %v322
    %422 = vmatpush.bf16.msra.mxu0 %v321
    %423 = vmatmul.bf16.gmra.mxu0 %v79
    %v424 = vpop.f32.mrf.mxu0
    %v425 = vadd.f32 %v411, %v424
    %v426 = vpop.f32.mrf.mxu0
    %v427 = vadd.f32 %v413, %v426
    %428 = vdwg.mxu0
    %429 = vmatpush.bf16.msra.mxu0 0
    %430 = vmatpush.bf16.msra.mxu0 0
    %431 = vmatpush.bf16.msra.mxu0 0
    %432 = vmatpush.bf16.msra.mxu0 0
    %433 = vmatpush.bf16.msra.mxu0 %v332
    %434 = vmatpush.bf16.msra.mxu0 %v331
    %435 = vmatpush.bf16.msra.mxu0 %v330
    %436 = vmatpush.bf16.msra.mxu0 %v329
    %437 = vmatmul.bf16.gmra.mxu0 %v371
    %v438 = vpop.f32.mrf.mxu0
    %v439 = vadd.f32 %v425, %v438
    %v440 = vpop.f32.mrf.mxu0
    %v441 = vadd.f32 %v427, %v440
    %442 = vdwg.mxu0
    %v443 = vtanh.pop %v439
    %v444 = vtanh.pop %v441
    %v445 = vpack.c.bf16 %v444, %v443
    %v446 = vld [vmem:[#allocation7] sm:$0xf]
    %v447 = vld [vmem:[#allocation7 + $0x4] sm:$0xf]
    %v448 = vld [vmem:[#allocation7 + $0x8] sm:$0xf]
    %v449 = vld [vmem:[#allocation7 + $0xc] sm:$0xf]
    %v450 = vld [vmem:[#allocation7 + $0x10] sm:$0xf]
    %v451 = vld [vmem:[#allocation7 + $0x14] sm:$0xf]
    %v452 = vld [vmem:[#allocation7 + $0x18] sm:$0xf]
    %v453 = vld [vmem:[#allocation7 + $0x1c] sm:$0xf]
    %v454 = vld [vmem:[#allocation7 + $0x20] sm:$0xf]
    %v455 = vld [vmem:[#allocation7 + $0x24] sm:$0xf]
    %v456 = vld [vmem:[#allocation7 + $0x28] sm:$0xf]
    %v457 = vld [vmem:[#allocation7 + $0x2c] sm:$0xf]
    %v458 = vld [vmem:[#allocation7 + $0x30] sm:$0xf]
    %v459 = vld [vmem:[#allocation7 + $0x34] sm:$0xf]
    %v460 = vld [vmem:[#allocation7 + $0x38] sm:$0xf]
    %v461 = vld [vmem:[#allocation7 + $0x3c] sm:$0xf]
    %v462 = vld [vmem:[%s3] sm:$0x1]
    %v464 = vperm.slane %v462, 0
    %v482 = vunpack.c.l.b16 %v446
    %v483 = vunpack.c.l.b16 %v447
    %v484 = vunpack.c.l.b16 %v448
    %v485 = vunpack.c.l.b16 %v449
    %v486 = vunpack.c.l.b16 %v450
    %v487 = vunpack.c.l.b16 %v451
    %v488 = vunpack.c.l.b16 %v452
    %v489 = vunpack.c.l.b16 %v453
    %v490 = vunpack.c.l.b16 %v454
    %v491 = vunpack.c.l.b16 %v455
    %v492 = vunpack.c.l.b16 %v456
    %v493 = vunpack.c.l.b16 %v457
    %v494 = vunpack.c.l.b16 %v458
    %v495 = vunpack.c.l.b16 %v459
    %v496 = vunpack.c.l.b16 %v460
    %v497 = vunpack.c.l.b16 %v461
    %v498 = vpack.c.b16 %v483, %v482
    %v499 = vpack.c.b16 %v485, %v484
    %v500 = vpack.c.b16 %v487, %v486
    %v501 = vpack.c.b16 %v489, %v488
    %v502 = vpack.c.b16 %v491, %v490
    %v503 = vpack.c.b16 %v493, %v492
    %v504 = vpack.c.b16 %v495, %v494
    %v505 = vpack.c.b16 %v497, %v496
    %514 = vmatpush.bf16.msra.mxu0 %v505
    %515 = vmatpush.bf16.msra.mxu0 %v504
    %516 = vmatpush.bf16.msra.mxu0 %v503
    %517 = vmatpush.bf16.msra.mxu0 %v502
    %518 = vmatpush.bf16.msra.mxu0 %v501
    %519 = vmatpush.bf16.msra.mxu0 %v500
    %520 = vmatpush.bf16.msra.mxu0 %v499
    %521 = vmatpush.bf16.msra.mxu0 %v498
    %522 = vmatmul.bf16.gmra.mxu0 %v445
    %v523 = vpop.f32.mrf.mxu0
    %v524 = vadd.f32 %v464, %v523
    %v525 = vpop.f32.mrf.mxu0
    %v526 = vadd.f32 %v464, %v525
    %527 = vdwg.mxu0
    %v528 = vpack.c.bf16 %v524, %v524
    %v529 = vpack.c.bf16 %v526, %v526
    %530 = vst [vmem:[#allocation8] sm:$0xf] %v528
    %531 = vst [vmem:[#allocation8 + $0x4] sm:$0xf] %v529
    // Predicated region
    $region30: #{tpu_custom_call.1} parent=1 // pred_check
      _
    $region31: #{tpu_custom_call.1} parent=1 // pred_check_branch
      %533 = sbr.rel (0) target = $region33
    $region32: #{tpu_custom_call.1} parent=1 // pred_region
      %535 = vsyncadd [#allocation4], 0
      %s536 = sshll.u32 [#allocation8], 4
      %s537 = int_to_ptr.vmem [resolvable:$true] %s536
      %s538 = sshll.u32 %s4, 4
      %s539 = int_to_ptr.hbm [resolvable:$true] %s538
      %544 = dma.vmem_to_hbm [thread:$0]  %s537, 128, %s539, [#allocation4], 64, 64, 4
    $region33: #{tpu_custom_call.1} parent=1 // pred_fallthru
      _
    // Predicated region
    $region34: #{tpu_custom_call.1} parent=1 // pred_check
      _
    $region35: #{tpu_custom_call.1} parent=1 // pred_check_branch
      %546 = sbr.rel (0) target = $region37
    $region36: #{tpu_custom_call.1} parent=1 // pred_region
      %548 = dma.done [#allocation4], 128
    $region37: #{tpu_custom_call.1} parent=1 // pred_fallthru
      _
    %549 = vsyncpa [#allocation3], 1
    %550 = vsyncpa [#allocation6], 1
    %551 = vsyncpa [#allocation4], 1

</llo_original>
